<compile_context>
chip_gen: v5e
topology: v5e:2x2
jax: 0.10.0
libtpu: 0.0.40
codegen_flags: <defaults>
</compile_context>

<pallas_src>
import functools

import jax
import jax.numpy as jnp
from jax.experimental import pallas as pl
from jax.experimental.pallas import tpu as pltpu

EPS = 1e-08            # matches `esp` in the torch reference
LANES = 128
SUBLANES = 8
MAX_ROW_BLOCK = 4096   # (4096, 128) f32 == 2 MiB per input per pipeline buffer
MAX_SPLITS = 2         # leading split axis: both TensorCores on v7x, harmless on v5e/v6e
VMEM_LIMIT_BYTES = 48 << 20   # 2 inputs x 2 bufs x 2 MiB I/O + elementwise temporaries + headroom


def _elemwise_loss(p, g):
    """1 - (sqrt(p*g+eps) + sqrt((1-p)*(1-g)+eps)), computed in f32."""
    p = p.astype(jnp.float32)
    g = g.astype(jnp.float32)
    return 1.0 - (jnp.sqrt(p * g + EPS) + jnp.sqrt((1.0 - p) * (1.0 - g) + EPS))


def _make_kernel(n_rows, row_block):
    """Kernel closed over static sizes (the valid row count is known at trace time)."""

    def kernel(p_ref, g_ref, out_ref):
        i = pl.program_id(1)

        # Zero the resident per-split partial-sum block at the start of each split.
        @pl.when(i == 0)
        def _():
            out_ref[...] = jnp.zeros_like(out_ref)

        loss = _elemwise_loss(p_ref[...], g_ref[...])

        # Scalar row budget of this *logical* block (row-granular: no per-element
        # global-index math, no int32 overflow for huge inputs).
        block_idx = pl.program_id(0) * pl.num_programs(1) + i
        rows_remaining = n_rows - block_idx * row_block

        @pl.when(rows_remaining >= row_block)
        def _():
            # Interior block (common case): unmasked, pure VPU adds into the
            # vreg-shaped (8, 128) per-lane partial sums living in the output block.
            out_ref[...] += jnp.sum(
                loss.reshape(row_block // SUBLANES, SUBLANES, LANES), axis=0)

        @pl.when(rows_remaining < row_block)
        def _():
            # Ragged last block or clamped out-of-range block: mask whole rows.
            row_ids = jax.lax.broadcasted_iota(jnp.int32, (row_block, LANES), 0)
            masked = jnp.where(row_ids < rows_remaining, loss, 0.0)
            out_ref[...] += jnp.sum(
                masked.reshape(row_block // SUBLANES, SUBLANES, LANES), axis=0)

    return kernel


def _partial_sums(p2, g2, row_block, dim_sems=None):
    """(rows, 128) inputs -> (num_splits*8, 128) f32 per-lane partial loss sums."""
    rows = p2.shape[0]
    blocks_total = -(-rows // row_block)
    num_splits = min(MAX_SPLITS, blocks_total)
    steps = -(-blocks_total // num_splits)

    if dim_sems is None:
        dim_sems = (_dimension_semantics() if num_splits > 1
                    else ("arbitrary", "arbitrary"))

    def in_map(c, i):
        # Clamp logical blocks past the end onto the last real block; their contribution
        # is zeroed by the in-kernel row mask (which uses the unclamped logical index).
        return (jnp.minimum(c * steps + i, blocks_total - 1), 0)

    in_spec = pl.BlockSpec((row_block, LANES), in_map)
    out_spec = pl.BlockSpec((SUBLANES, LANES), lambda c, i: (c, 0))

    return pl.pallas_call(
        _make_kernel(rows, row_block),
        out_shape=jax.ShapeDtypeStruct((num_splits * SUBLANES, LANES), jnp.float32),
        grid=(num_splits, steps),
        in_specs=[in_spec, in_spec],
        out_specs=out_spec,
        compiler_params=pltpu.CompilerParams(
            dimension_semantics=dim_sems,
            vmem_limit_bytes=VMEM_LIMIT_BYTES,
        ),
    )(p2, g2)


@functools.lru_cache(maxsize=None)
def _dimension_semantics():
    """Grid semantics when the split axis has more than one entry.

    Prefer CORE_PARALLEL (shards the split axis across v7x's two TensorCores); verify it
    once with a tiny probe and fall back to "parallel" (megacore default), then to
    "arbitrary" (sequential, always correct).
    """
    candidates = []
    if hasattr(pltpu, "CORE_PARALLEL") and hasattr(pltpu, "ARBITRARY"):
        candidates.append((pltpu.CORE_PARALLEL, pltpu.ARBITRARY))
    candidates.append(("parallel", "arbitrary"))

    probe_rows = 4 * SUBLANES                      # 2 splits x 2 blocks at row_block = 8
    xs = jnp.linspace(0.01, 0.99, probe_rows * LANES, dtype=jnp.float32)
    p2 = xs.reshape(probe_rows, LANES)
    g2 = xs[::-1].reshape(probe_rows, LANES)
    want = float(jnp.sum(_elemwise_loss(p2, g2)))
    for dim_sems in candidates:
        try:
            got = float(jnp.sum(_partial_sums(p2, g2, SUBLANES, dim_sems)))
        except Exception:
            continue
        if abs(got - want) <= 1e-3 * max(1.0, abs(want)):
            return dim_sems
    return ("arbitrary", "arbitrary")


def fidelity_loss(p, g, max_row_block=MAX_ROW_BLOCK):
    """Matches torch Fidelity_Loss.forward(p, g): mean of the fidelity loss over all elements."""
    p_flat = jnp.reshape(p, (-1,))
    g_flat = jnp.reshape(g, (-1,))
    n = p_flat.shape[0]
    if n == 0:
        return jnp.float32(jnp.nan)        # torch.mean of an empty tensor

    # Sublane granule: 8 rows for 32-bit inputs, 16 for bf16, 32 for 8-bit packed dtypes.
    granule = max(SUBLANES, 32 // p_flat.dtype.itemsize, 32 // g_flat.dtype.itemsize)
    rows_kernel = (n // (granule * LANES)) * granule    # rows handled by the Pallas kernel
    tail_start = rows_kernel * LANES                    # < granule*128 elements left over

    total = jnp.float32(0.0)
    if rows_kernel > 0:
        # Zero-copy reshape when n is already tile-aligned; otherwise a cheap prefix slice
        # (no full-array jnp.pad copy).
        p2 = p_flat[:tail_start].reshape(rows_kernel, LANES)
        g2 = g_flat[:tail_start].reshape(rows_kernel, LANES)
        mrb = max(granule, (max_row_block // granule) * granule)
        row_block = mrb if rows_kernel >= mrb else rows_kernel
        # Single cross-lane reduce of the tiny (num_splits*8, 128) partials, once, here.
        total = total + jnp.sum(_partial_sums(p2, g2, row_block))
    if tail_start < n:
        # Sub-tile tail (< granule*128 elements): trivial plain-JAX reduction.
        total = total + jnp.sum(_elemwise_loss(p_flat[tail_start:], g_flat[tail_start:]))
    return total / jnp.float32(n)


def fidelity_loss_ref(p, g):
    p = jnp.reshape(p, (-1, 1)).astype(jnp.float32)
    g = jnp.reshape(g, (-1, 1)).astype(jnp.float32)
    loss = 1.0 - (jnp.sqrt(p * g + EPS) + jnp.sqrt((1.0 - p) * (1.0 - g) + EPS))
    return jnp.mean(loss)


if __name__ == "__main__":
    key = jax.random.PRNGKey(0)
    kp, kg = jax.random.split(key)

    # probabilities in [0, 1], shape consistent with a (batch, channels, H, W) prediction map
    shape = (2, 4, 16, 16)
    p = jax.random.uniform(kp, shape, dtype=jnp.float32)
    g = jax.random.uniform(kg, shape, dtype=jnp.float32)

    out = fidelity_loss(p, g)
    jax.block_until_ready(out)
    ref = fidelity_loss_ref(p, g)
    assert jnp.allclose(out, ref, atol=1e-5, rtol=1e-5), (out, ref)

    # Extra sanity checks (small shapes; forced-small row blocks exercise the multi-block
    # split, ragged-last-block, clamped-block and wrapper-tail paths; plus bf16 inputs).
    checks = [
        ((3, 5, 17, 13), jnp.float32, 8),      # lane-unaligned tail + clamped block
        ((5, 4, 16, 16), jnp.float32, 16),     # ragged last block + clamped block
        ((2, 4, 16, 16), jnp.bfloat16, None),  # bf16 inputs, f32 math inside the kernel
    ]
    for idx, (shp, dt, rb) in enumerate(checks):
        k1, k2 = jax.random.split(jax.random.fold_in(key, idx + 1))
        pe = jax.random.uniform(k1, shp, dtype=jnp.float32).astype(dt)
        ge = jax.random.uniform(k2, shp, dtype=jnp.float32).astype(dt)
        kwargs = {} if rb is None else {"max_row_block": rb}
        oe = fidelity_loss(pe, ge, **kwargs)
        jax.block_until_ready(oe)
        re = fidelity_loss_ref(pe, ge)
        assert jnp.allclose(oe, re, atol=1e-5, rtol=1e-5), (shp, str(dt), oe, re)

    print("KERNEL_OK")
</pallas_src>

<mosaic_0001>
module attributes {stable_mosaic.version = 11 : i64} {
  func.func @kernel(%arg0: i32, %arg1: i32, %arg2: memref<16x128xf32, #tpu.memory_space<vmem>>, %arg3: memref<16x128xf32, #tpu.memory_space<vmem>>, %arg4: memref<8x128xf32, #tpu.memory_space<vmem>>) attributes {dimension_semantics = [#tpu.dimension_semantics<arbitrary>, #tpu.dimension_semantics<arbitrary>], iteration_bounds = array<i64: 1, 1>, scalar_prefetch = 0 : i64, scratch_operands = 0 : i64, tpu.core_type = #tpu.core_type<tc>, window_params = [{transform_indices = @transform_0, window_bounds = array<i64: 16, 128>}, {transform_indices = @transform_1, window_bounds = array<i64: 16, 128>}, {transform_indices = @transform_2, window_bounds = array<i64: 8, 128>}]} {
    %c0_i32 = arith.constant 0 : i32
    %0 = arith.cmpi eq, %arg1, %c0_i32 : i32
    %1 = arith.extui %0 : i1 to i32
    %c0_i32_0 = arith.constant 0 : i32
    %2 = arith.cmpi ne, %1, %c0_i32_0 : i32
    scf.if %2 {
      %cst_13 = arith.constant 0.000000e+00 : f32
      %30 = vector.broadcast %cst_13 : f32 to vector<8x128xf32>
      %c0_14 = arith.constant 0 : index
      %c0_15 = arith.constant 0 : index
      %31 = vector.load %arg4[%c0_14, %c0_15] : memref<8x128xf32, #tpu.memory_space<vmem>>, vector<8x128xf32>
      tpu.vector_store %arg4[%c0_14, %c0_15], %30 {strides = array<i32>} : memref<8x128xf32, #tpu.memory_space<vmem>>, vector<8x128xf32>,
    } else {
    }
    %c0 = arith.constant 0 : index
    %c0_1 = arith.constant 0 : index
    %3 = vector.load %arg2[%c0, %c0_1] : memref<16x128xf32, #tpu.memory_space<vmem>>, vector<16x128xf32>
    %c0_2 = arith.constant 0 : index
    %c0_3 = arith.constant 0 : index
    %4 = vector.load %arg3[%c0_2, %c0_3] : memref<16x128xf32, #tpu.memory_space<vmem>>, vector<16x128xf32>
    %5 = arith.mulf %3, %4 : vector<16x128xf32>
    %cst = arith.constant 9.99999993E-9 : f32
    %6 = vector.broadcast %cst : f32 to vector<16x128xf32>
    %7 = arith.addf %5, %6 : vector<16x128xf32>
    %8 = math.sqrt %7 : vector<16x128xf32>
    %cst_4 = arith.constant 1.000000e+00 : f32
    %9 = vector.broadcast %cst_4 : f32 to vector<16x128xf32>
    %10 = arith.subf %9, %3 : vector<16x128xf32>
    %cst_5 = arith.constant 1.000000e+00 : f32
    %11 = vector.broadcast %cst_5 : f32 to vector<16x128xf32>
    %12 = arith.subf %11, %4 : vector<16x128xf32>
    %13 = arith.mulf %10, %12 : vector<16x128xf32>
    %cst_6 = arith.constant 9.99999993E-9 : f32
    %14 = vector.broadcast %cst_6 : f32 to vector<16x128xf32>
    %15 = arith.addf %13, %14 : vector<16x128xf32>
    %16 = math.sqrt %15 : vector<16x128xf32>
    %17 = arith.addf %8, %16 : vector<16x128xf32>
    %cst_7 = arith.constant 1.000000e+00 : f32
    %18 = vector.broadcast %cst_7 : f32 to vector<16x128xf32>
    %19 = arith.subf %18, %17 : vector<16x128xf32>
    %c1_i32 = arith.constant 1 : i32
    %20 = arith.muli %arg0, %c1_i32 : i32
    %21 = arith.addi %20, %arg1 : i32
    %c16_i32 = arith.constant 16 : i32
    %22 = arith.muli %21, %c16_i32 : i32
    %c16_i32_8 = arith.constant 16 : i32
    %23 = arith.subi %c16_i32_8, %22 : i32
    %c16_i32_9 = arith.constant 16 : i32
    %24 = arith.cmpi sge, %23, %c16_i32_9 : i32
    %25 = arith.extui %24 : i1 to i32
    %c0_i32_10 = arith.constant 0 : i32
    %26 = arith.cmpi ne, %25, %c0_i32_10 : i32
    scf.if %26 {
      %c0_13 = arith.constant 0 : index
      %c0_14 = arith.constant 0 : index
      %30 = vector.load %arg4[%c0_13, %c0_14] : memref<8x128xf32, #tpu.memory_space<vmem>>, vector<8x128xf32>
      %31 = vector.shape_cast %19 : vector<16x128xf32> to vector<2x8x128xf32>
      %cst_15 = arith.constant dense<0.000000e+00> : vector<8x128xf32>
      %32 = vector.multi_reduction <add>, %31, %cst_15 [0] : vector<2x8x128xf32> to vector<8x128xf32>
      %33 = arith.addf %30, %32 : vector<8x128xf32>
      %c0_16 = arith.constant 0 : index
      %c0_17 = arith.constant 0 : index
      %34 = vector.load %arg4[%c0_16, %c0_17] : memref<8x128xf32, #tpu.memory_space<vmem>>, vector<8x128xf32>
      tpu.vector_store %arg4[%c0_16, %c0_17], %33 {strides = array<i32>} : memref<8x128xf32, #tpu.memory_space<vmem>>, vector<8x128xf32>,
    } else {
    }
    %c16_i32_11 = arith.constant 16 : i32
    %27 = arith.cmpi slt, %23, %c16_i32_11 : i32
    %28 = arith.extui %27 : i1 to i32
    %c0_i32_12 = arith.constant 0 : i32
    %29 = arith.cmpi ne, %28, %c0_i32_12 : i32
    scf.if %29 {
      %30 = tpu.iota {dimensions = array<i32: 0>} : vector<16x128xi32>
      %31 = vector.broadcast %23 : i32 to vector<16x128xi32>
      %32 = arith.cmpi slt, %30, %31 : vector<16x128xi32>
      %cst_13 = arith.constant 0.000000e+00 : f32
      %33 = vector.broadcast %cst_13 : f32 to vector<16x128xf32>
      %34 = arith.select %32, %19, %33 : vector<16x128xi1>, vector<16x128xf32>
      %c0_14 = arith.constant 0 : index
      %c0_15 = arith.constant 0 : index
      %35 = vector.load %arg4[%c0_14, %c0_15] : memref<8x128xf32, #tpu.memory_space<vmem>>, vector<8x128xf32>
      %36 = vector.shape_cast %34 : vector<16x128xf32> to vector<2x8x128xf32>
      %cst_16 = arith.constant dense<0.000000e+00> : vector<8x128xf32>
      %37 = vector.multi_reduction <add>, %36, %cst_16 [0] : vector<2x8x128xf32> to vector<8x128xf32>
      %38 = arith.addf %35, %37 : vector<8x128xf32>
      %c0_17 = arith.constant 0 : index
      %c0_18 = arith.constant 0 : index
      %39 = vector.load %arg4[%c0_17, %c0_18] : memref<8x128xf32, #tpu.memory_space<vmem>>, vector<8x128xf32>
      tpu.vector_store %arg4[%c0_17, %c0_18], %38 {strides = array<i32>} : memref<8x128xf32, #tpu.memory_space<vmem>>, vector<8x128xf32>,
    } else {
    }
    return
  }
  func.func @transform_0(%arg0: i32, %arg1: i32) -> (i32, i32) {
    %c1_i32 = arith.constant 1 : i32
    %0 = arith.muli %arg0, %c1_i32 : i32
    %1 = arith.addi %0, %arg1 : i32
    %c0_i32 = arith.constant 0 : i32
    %2 = arith.minsi %1, %c0_i32 : i32
    %c0_i32_0 = arith.constant 0 : i32
    %c0_i32_1 = arith.constant 0 : i32
    return %2, %c0_i32_0 : i32, i32
  }
  func.func @transform_1(%arg0: i32, %arg1: i32) -> (i32, i32) {
    %c1_i32 = arith.constant 1 : i32
    %0 = arith.muli %arg0, %c1_i32 : i32
    %1 = arith.addi %0, %arg1 : i32
    %c0_i32 = arith.constant 0 : i32
    %2 = arith.minsi %1, %c0_i32 : i32
    %c0_i32_0 = arith.constant 0 : i32
    %c0_i32_1 = arith.constant 0 : i32
    return %2, %c0_i32_0 : i32, i32
  }
  func.func @transform_2(%arg0: i32, %arg1: i32) -> (i32, i32) {
    %c0_i32 = arith.constant 0 : i32
    %c0_i32_0 = arith.constant 0 : i32
    return %arg0, %c0_i32 : i32, i32
  }
}

</mosaic_0001>

<llo_original>
// kernel: tpu_custom_call.1
$region0: #{tpu_custom_call.1}
  #allocation0 [shape = 'u32[]', space=smem, size = 0x4, offset = 0x4, fixed_abs, tag = 'smem constant byte address 0x4 - core index']
  #allocation1 [shape = 'u32[72,128]{1,0:T(1,128)}', space=vmem, size = 0x9000, scoped, tag = 'internal scratch']
  %s0 = inlined_call_operand.hbm [shape: f32[16,128], index: 0, kind: input, shape index: {}]
  %s1 = inlined_call_operand.hbm [shape: f32[16,128], index: 1, kind: input, shape index: {}]
  %s2 = inlined_call_operand.hbm [shape: f32[8,128], index: 2, kind: output, shape index: {}]
  %s3 = sld [smem:[#allocation0]]
  $region38: #{tpu_custom_call.1} parent=0
    _
  %s5 = ssub.s32 1, %s3
  %s6 = scalar_select 0, %s5, %s3
  $region1: #{tpu_custom_call.1} parent=0
    #allocation2 [shape = 'u8[8192]{0}', space=vmem, size = 0x2000, scoped, tag = 'input window, operand 0, single buffered']
    #allocation3 [shape = 's32[1]{0}', space=sflag, size = 0x4, scoped, tag = 'scoped memory for tpu_custom_call.1']
    #allocation4 [shape = 's32[1]{0}', space=sflag, size = 0x4, scoped, tag = 'scoped memory for tpu_custom_call.1']
    #allocation5 [shape = 'u8[8192]{0}', space=vmem, size = 0x2000, scoped, tag = 'input window, operand 1, single buffered']
    #allocation6 [shape = 's32[1]{0}', space=sflag, size = 0x4, scoped, tag = 'scoped memory for tpu_custom_call.1']
    #allocation7 [shape = 'u8[4096]{0}', space=vmem, size = 0x1000, scoped, tag = 'output window, operand 0, single buffered']
    %7 = vsyncpa [#allocation3], 0
    %8 = vsyncpa [#allocation6], 0
    %9 = vsyncpa [#allocation4], 0
    // Predicated region
    $region2: #{tpu_custom_call.1} parent=1 // pred_check
      _
    $region3: #{tpu_custom_call.1} parent=1 // pred_check_branch
      %11 = sbr.rel (0) target = $region5
    $region4: #{tpu_custom_call.1} parent=1 // pred_region
      %s12 = sadd.s32 0, 0
      %p13 = scmp.lt.s32.totalorder %s12, 0
      %s14 = scalar_select %p13, %s12, 0
      %s15 = smul.u32 2, %s14
      %17 = vsyncadd [#allocation3], 0
      %s18 = smul.addr %s15, 8
      %s19 = scalar_lea.hbm %s0, %s18
      %s20 = sshll.u32 %s19, 4
      %s21 = int_to_ptr.hbm [resolvable:$true] %s20
      %s22 = sshll.u32 [#allocation2], 4
      %s23 = int_to_ptr.vmem [resolvable:$true] %s22
      %28 = dma.hbm_to_vmem [thread:$0]  %s21, 256, %s23, [#allocation3], 128, 128, 8
    $region5: #{tpu_custom_call.1} parent=1 // pred_fallthru
      _
    // Predicated region
    $region6: #{tpu_custom_call.1} parent=1 // pred_check
      _
    $region7: #{tpu_custom_call.1} parent=1 // pred_check_branch
      %30 = sbr.rel (0) target = $region9
    $region8: #{tpu_custom_call.1} parent=1 // pred_region
      %s31 = sadd.s32 0, 0
      %p32 = scmp.lt.s32.totalorder %s31, 0
      %s33 = scalar_select %p32, %s31, 0
      %s34 = smul.u32 2, %s33
      %36 = vsyncadd [#allocation6], 0
      %s37 = smul.addr %s34, 8
      %s38 = scalar_lea.hbm %s1, %s37
      %s39 = sshll.u32 %s38, 4
      %s40 = int_to_ptr.hbm [resolvable:$true] %s39
      %s41 = sshll.u32 [#allocation5], 4
      %s42 = int_to_ptr.vmem [resolvable:$true] %s41
      %47 = dma.hbm_to_vmem [thread:$0]  %s40, 256, %s42, [#allocation6], 128, 128, 8
    $region9: #{tpu_custom_call.1} parent=1 // pred_fallthru
      _
    // Predicated region
    $region10: #{tpu_custom_call.1} parent=1 // pred_check
      _
    $region11: #{tpu_custom_call.1} parent=1 // pred_check_branch
      %49 = sbr.rel (0) target = $region13
    $region12: #{tpu_custom_call.1} parent=1 // pred_region
      %51 = dma.done [#allocation3], 256
    $region13: #{tpu_custom_call.1} parent=1 // pred_fallthru
      _
    // Predicated region
    $region14: #{tpu_custom_call.1} parent=1 // pred_check
      _
    $region15: #{tpu_custom_call.1} parent=1 // pred_check_branch
      %53 = sbr.rel (0) target = $region17
    $region16: #{tpu_custom_call.1} parent=1 // pred_region
      %55 = dma.done [#allocation6], 256
    $region17: #{tpu_custom_call.1} parent=1 // pred_fallthru
      _
    %s56 = sadd.s32 0, 0
    %p57 = scmp.lt.s32.totalorder %s56, 0
    %s58 = scalar_select %p57, %s56, 0
    %s59 = smul.u32 2, %s58
    %s60 = sadd.s32 0, 0
    %p61 = scmp.lt.s32.totalorder %s60, 0
    %s62 = scalar_select %p61, %s60, 0
    %s63 = smul.u32 2, %s62
    %p64 = scmp.eq.s32.totalorder 0, 0
    // Predicated region
    $region18: #{tpu_custom_call.1} parent=1 // pred_check
      %p65 = pneg %p64
    $region19: #{tpu_custom_call.1} parent=1 // pred_check_branch
      %67 = sbr.rel (%p65) target = $region21
    $region20: #{tpu_custom_call.1} parent=1 // pred_region
      %68 = vst [vmem:[#allocation7] sm:$0xff] 0.0
    $region21: #{tpu_custom_call.1} parent=1 // pred_fallthru
      _
    %v69 = vld [vmem:[#allocation2] sm:$0xff]
    %v70 = vld [vmem:[#allocation2 + $0x8] sm:$0xff]
    %v71 = vld [vmem:[#allocation5] sm:$0xff]
    %v72 = vld [vmem:[#allocation5 + $0x8] sm:$0xff]
    %v73 = vmul.f32 %v69, %v71
    %v74 = vmul.f32 %v70, %v72
    %v75 = vadd.f32 %v73, 1e-08
    %v76 = vadd.f32 %v74, 1e-08
    %v77 = vrsqrt.pop %v75
    %v78 = vmul.f32 %v77, %v75
    %v79 = vmul.f32 %v78, %v77
    %v80 = vmul.f32 0.5, %v79
    %v81 = vsub.f32 1.5, %v80
    %v82 = vmul.f32 %v77, %v81
    %v83 = vmul.f32 %v75, %v82
    %vm84 = vcmp.eq.f32.partialorder %v75, inf
    %v85 = vsel %vm84, %v75, %v83
    %vm86 = vcmp.eq.f32.partialorder %v75, 0.0
    %v87 = vand.u32 %v75, 2147483648
    %v88 = vsel %vm86, %v87, %v85
    %v89 = vrsqrt.pop %v76
    %v90 = vmul.f32 %v89, %v76
    %v91 = vmul.f32 %v90, %v89
    %v92 = vmul.f32 0.5, %v91
    %v93 = vsub.f32 1.5, %v92
    %v94 = vmul.f32 %v89, %v93
    %v95 = vmul.f32 %v76, %v94
    %vm96 = vcmp.eq.f32.partialorder %v76, inf
    %v97 = vsel %vm96, %v76, %v95
    %vm98 = vcmp.eq.f32.partialorder %v76, 0.0
    %v99 = vand.u32 %v76, 2147483648
    %v100 = vsel %vm98, %v99, %v97
    %v101 = vsub.f32 1.0, %v69
    %v102 = vsub.f32 1.0, %v70
    %v103 = vsub.f32 1.0, %v71
    %v104 = vsub.f32 1.0, %v72
    %v105 = vmul.f32 %v101, %v103
    %v106 = vmul.f32 %v102, %v104
    %v107 = vadd.f32 %v105, 1e-08
    %v108 = vadd.f32 %v106, 1e-08
    %v109 = vrsqrt.pop %v107
    %v110 = vmul.f32 %v109, %v107
    %v111 = vmul.f32 %v110, %v109
    %v112 = vmul.f32 0.5, %v111
    %v113 = vsub.f32 1.5, %v112
    %v114 = vmul.f32 %v109, %v113
    %v115 = vmul.f32 %v107, %v114
    %vm116 = vcmp.eq.f32.partialorder %v107, inf
    %v117 = vsel %vm116, %v107, %v115
    %vm118 = vcmp.eq.f32.partialorder %v107, 0.0
    %v119 = vand.u32 %v107, 2147483648
    %v120 = vsel %vm118, %v119, %v117
    %v121 = vrsqrt.pop %v108
    %v122 = vmul.f32 %v121, %v108
    %v123 = vmul.f32 %v122, %v121
    %v124 = vmul.f32 0.5, %v123
    %v125 = vsub.f32 1.5, %v124
    %v126 = vmul.f32 %v121, %v125
    %v127 = vmul.f32 %v108, %v126
    %vm128 = vcmp.eq.f32.partialorder %v108, inf
    %v129 = vsel %vm128, %v108, %v127
    %vm130 = vcmp.eq.f32.partialorder %v108, 0.0
    %v131 = vand.u32 %v108, 2147483648
    %v132 = vsel %vm130, %v131, %v129
    %v133 = vadd.f32 %v88, %v120
    %v134 = vadd.f32 %v100, %v132
    %v135 = vsub.f32 1.0, %v133
    %v136 = vsub.f32 1.0, %v134
    %s137 = sadd.s32 0, 0
    %s138 = smul.u32 %s137, 16
    %s139 = ssub.s32 16, %s138
    %p140 = scmp.ge.s32.totalorder %s139, 16
    // Predicated region
    $region22: #{tpu_custom_call.1} parent=1 // pred_check
      %p141 = pneg %p140
    $region23: #{tpu_custom_call.1} parent=1 // pred_check_branch
      %143 = sbr.rel (%p141) target = $region25
    $region24: #{tpu_custom_call.1} parent=1 // pred_region
      %v144 = vld [vmem:[#allocation7] sm:$0xff]
      %v145 = vadd.f32 %v135, %v136
      %v146 = vadd.f32 %v144, %v145
      %147 = vst [vmem:[#allocation7] sm:$0xff] %v146
    $region25: #{tpu_custom_call.1} parent=1 // pred_fallthru
      _
    %p148 = scmp.lt.s32.totalorder %s139, 16
    // Predicated region
    $region26: #{tpu_custom_call.1} parent=1 // pred_check
      %p149 = pneg %p148
    $region27: #{tpu_custom_call.1} parent=1 // pred_check_branch
      %151 = sbr.rel (%p149) target = $region29
    $region28: #{tpu_custom_call.1} parent=1 // pred_region
      %v152 = vlaneseq
      %v153 = vshrl.u32 %v152, 7
      %v154 = vadd.s32 %v153, 8
      %v155 = vstv %s139
      %vm156 = vcmp.lt.s32.totalorder %v153, %v155
      %vm157 = vcmp.lt.s32.totalorder %v154, %v155
      %v158 = vsel %vm156, %v135, 0.0
      %v159 = vsel %vm157, %v136, 0.0
      %v160 = vld [vmem:[#allocation7] sm:$0xff]
      %v161 = vadd.f32 %v158, %v159
      %v162 = vadd.f32 %v160, %v161
      %163 = vst [vmem:[#allocation7] sm:$0xff] %v162
    $region29: #{tpu_custom_call.1} parent=1 // pred_fallthru
      _
    // Predicated region
    $region30: #{tpu_custom_call.1} parent=1 // pred_check
      _
    $region31: #{tpu_custom_call.1} parent=1 // pred_check_branch
      %165 = sbr.rel (0) target = $region33
    $region32: #{tpu_custom_call.1} parent=1 // pred_region
      %167 = vsyncadd [#allocation4], 0
      %s169 = sshll.u32 [#allocation7], 4
      %s170 = int_to_ptr.vmem [resolvable:$true] %s169
      %s171 = sshll.u32 %s2, 4
      %s172 = int_to_ptr.hbm [resolvable:$true] %s171
      %174 = dma.vmem_to_hbm [thread:$0]  %s170, 128, %s172, [#allocation4]
    $region33: #{tpu_custom_call.1} parent=1 // pred_fallthru
      _
    // Predicated region
    $region34: #{tpu_custom_call.1} parent=1 // pred_check
      _
    $region35: #{tpu_custom_call.1} parent=1 // pred_check_branch
      %176 = sbr.rel (0) target = $region37
    $region36: #{tpu_custom_call.1} parent=1 // pred_region
      %178 = dma.done [#allocation4], 128
    $region37: #{tpu_custom_call.1} parent=1 // pred_fallthru
      _
    %179 = vsyncpa [#allocation3], 1
    %180 = vsyncpa [#allocation6], 1
    %181 = vsyncpa [#allocation4], 1

</llo_original>
